<compile_context>
chip_gen: v7x
topology: tpu7x:2x2x1
jax: 0.10.0
libtpu: 0.0.40
codegen_flags: <defaults>
</compile_context>

<pallas_src>
import functools

import jax
import jax.numpy as jnp
from jax.experimental import pallas as pl
from jax.experimental.pallas import tpu as pltpu


def _micro_block_kernel(*refs, stride, H, W, Hout, planes, b_tile, act,
                        shortcut_mode, mm_dtype):
    """One batch tile (b_tile images) per grid step.

    x_ref is (b_tile, H, Cin*W) with lane = c*W + w.  All BN parameters are
    pre-folded into the (kron-expanded) weights / biases by the wrapper.
    """
    refs = list(refs)
    x_ref, wcat_ref, b1_ref, b2_ref, wd_ref, w3_ref, b3_ref = refs[:7]
    idx = 7
    rrow_ref = None
    if stride > 1:
        rrow_ref = refs[idx]
        idx += 1
    bsc_ref = None
    if shortcut_mode == 'project':
        bsc_ref = refs[idx]
        idx += 1
    out_ref, pad_ref, h2_ref = refs[idx], refs[idx + 1], refs[idx + 2]

    L1 = planes * W
    CinW = x_ref.shape[-1]
    Lout = out_ref.shape[-1]
    rows_per_img = H + 2
    # stride == 1: compute exactly the Hout output rows.
    # stride >  1: compute the full stride-1 depthwise rows and subsample them
    #              with a tiny 0/1 selection matmul (rrow) -> no strided loads.
    n_dw_rows = Hout if stride == 1 else H

    def act_fn(v):                                   # f32 VPU math everywhere
        if act == 'HSwish':
            return v * jnp.clip(v + 3.0, 0.0, 6.0) * (1.0 / 6.0)
        return jnp.maximum(v, 0.0)

    # ---- conv1 (+ fused shortcut projection): one tall lane-dense MXU matmul ----
    # bf16 operands, f32 accumulation; the f32 x_slab is kept for the identity
    # shortcut so only the matmul runs in bf16.
    x_slab = x_ref[...].reshape(b_tile * H, CinW)                      # f32
    full = jnp.dot(x_slab.astype(mm_dtype), wcat_ref[...],
                   preferred_element_type=jnp.float32)
    h1 = act_fn(full[:, :L1] + b1_ref[...])                            # (b_tile*H, L1) f32

    # ---- stage h1 (+ zero halo rows) per image into the padded VMEM scratch ----
    # NOTE: the two halo rows are re-zeroed every grid step on purpose.  Hoisting
    # this under pl.when(program_id == 0) is unsafe with
    # dimension_semantics=("parallel",): on v7x each TensorCore has its own VMEM
    # scratch and only one core ever sees program_id 0.  Cost: 2 row stores/image.
    zero_row = jnp.zeros((1, L1), jnp.float32)
    for b in range(b_tile):
        base = b * rows_per_img
        pad_ref[pl.ds(base, 1), :] = zero_row
        pad_ref[pl.ds(base + H + 1, 1), :] = zero_row
        pad_ref[pl.ds(base + 1, H), :] = h1[b * H:(b + 1) * H, :]

    # ---- depthwise 3x3: 3 contiguous row loads x 3 XLU lane rolls per image ----
    # Column-boundary masking is pre-folded (zeros) into wd_ref, so the roll
    # wrap-around between channel blocks contributes nothing.  The first tap
    # initializes the accumulator (no jnp.zeros + extra vadd).
    for b in range(b_tile):
        base = b * rows_per_img
        acc = None
        for dh in range(3):
            rows = pad_ref[pl.ds(base + dh, n_dw_rows), :]
            for dw in range(3):
                if dw == 1:
                    shifted = rows
                else:
                    shifted = pltpu.roll(rows, shift=(1 - dw) % L1, axis=1)
                term = shifted * wd_ref[dh * 3 + dw, :]
                acc = term if acc is None else acc + term
        if stride > 1:
            acc = jnp.dot(rrow_ref[...], acc, preferred_element_type=jnp.float32)
        h2_b = act_fn(acc + b2_ref[...])                               # (Hout, L1) f32
        h2_ref[pl.ds(b * Hout, Hout), :] = h2_b.astype(h2_ref.dtype)   # bf16 staging

    # ---- conv3 on the stacked slab (stride-W subsampling folded into w3_ref) ----
    out = jnp.dot(h2_ref[...], w3_ref[...],
                  preferred_element_type=jnp.float32) + b3_ref[...]

    # ---- shortcut (stride == 1 only) ----
    if shortcut_mode == 'identity':
        out = out + x_slab
    elif shortcut_mode == 'project':
        out = out + (full[:, L1:] + bsc_ref[...])

    out_ref[...] = out.reshape(b_tile, Hout, Lout).astype(out_ref.dtype)


def _fold_bn(gamma, beta, mean, var, eps=1e-5):
    scale = gamma / jnp.sqrt(var + eps)
    bias = beta - mean * scale
    return scale, bias


def _full_spec(a):
    nd = a.ndim
    return pl.BlockSpec(a.shape, lambda n, _nd=nd: (0,) * _nd)


def _pick_b_tile(N, H, in_lanes, l1, out_lanes, hout,
                 vmem_budget_bytes=24 * 1024 * 1024):
    """Images per grid step: target ~256 matmul rows (fills the 256-row MXU on
    v6e/v7x, 2x the 128-row MXU on v5e), keep >= 2 grid steps so both v7x
    TensorCores get work, and stay well inside v7x's 64 MiB physical / 32 MiB
    scoped-default VMEM (so no vmem_limit_bytes override is needed)."""
    def vmem_bytes(bt):
        in_blk = bt * H * in_lanes * 4
        out_blk = bt * hout * out_lanes * 4
        scratch = bt * (H + 2) * l1 * 4 + bt * hout * l1 * 2
        return 2 * (in_blk + out_blk) + scratch        # double-buffered blocks
    cap = max(1, 256 // max(H, 1))
    if N >= 2:
        cap = min(cap, N // 2)
    best = 1
    for c in range(1, min(cap, N) + 1):
        if N % c == 0 and vmem_bytes(c) <= vmem_budget_bytes:
            best = c
    return best


def micro_block_pallas_lanedense(x_ld, params, *, W, stride=1, act='ReLU',
                                 b_tile=None, mm_dtype=jnp.bfloat16, bn_eps=1e-5):
    """Lane-dense MicroBlock: x_ld is (N, H, Cin*W) with lane = c*W + w; returns
    (N, Hout, Cout*Wout).  Chain this variant directly between stacked blocks so
    activations never leave the lane-dense layout (no NCHW transposes)."""
    x_ld = x_ld.astype(jnp.float32)
    N, H, CinW = x_ld.shape
    Cin = CinW // W
    assert Cin * W == CinW, "last dim of x_ld must be Cin*W"

    # ---- fold BN (eval-mode running stats) into weights & biases ----
    s1, b1 = _fold_bn(*params['bn1'], eps=bn_eps)
    s2, b2 = _fold_bn(*params['bn2'], eps=bn_eps)
    s3, b3 = _fold_bn(*params['bn3'], eps=bn_eps)
    w1 = jnp.transpose(params['conv1_w'][:, :, 0, 0], (1, 0)) * s1[None, :]           # (Cin, planes)
    planes = w1.shape[1]
    wd = jnp.transpose(params['conv2_w'][:, 0, :, :], (1, 2, 0)) * s2[None, None, :]  # (3,3,planes)
    w3 = jnp.transpose(params['conv3_w'][:, :, 0, 0], (1, 0)) * s3[None, :]           # (planes, Cout)
    Cout = w3.shape[1]

    Hout = (H - 1) // stride + 1          # conv: k=3, pad=1
    Wout = (W - 1) // stride + 1
    L1 = planes * W
    Lout = Cout * Wout

    if stride == 1:
        shortcut_mode = 'project' if Cin != Cout else 'identity'
    else:
        shortcut_mode = 'none'

    # ---- kron-expanded 1x1 conv weights: lane-dense bf16 matmul operands ----
    eyeW = jnp.eye(W, dtype=jnp.float32)
    w1_big = jnp.kron(w1, eyeW)                                     # (Cin*W, planes*W)
    if shortcut_mode == 'project':
        ssc, bsc = _fold_bn(*params['bn_sc'], eps=bn_eps)
        wsc = jnp.transpose(params['conv_sc_w'][:, :, 0, 0], (1, 0)) * ssc[None, :]
        wcat = jnp.concatenate([w1_big, jnp.kron(wsc, eyeW)], axis=1)
        bsc_lane = jnp.repeat(bsc, Wout).reshape(1, Lout)
    else:
        wcat = w1_big
        bsc_lane = None
    wcat = wcat.astype(mm_dtype)

    # conv3 kron weight also performs the stride-W subsampling (0/1 selection cols).
    sel = (jnp.arange(W)[:, None] == stride * jnp.arange(Wout)[None, :]).astype(jnp.float32)
    w3_big = jnp.kron(w3, sel).astype(mm_dtype)                     # (planes*W, Cout*Wout)

    b1_lane = jnp.repeat(b1, W).reshape(1, L1)
    b2_lane = jnp.repeat(b2, W).reshape(1, L1)
    b3_lane = jnp.repeat(b3, Wout).reshape(1, Lout)

    # per-lane depthwise weights with column-boundary masks folded in (f32)
    wd_rep = jnp.repeat(wd, W, axis=-1)                             # (3, 3, planes*W)
    w_in = jnp.arange(L1) % W
    dw_off = jnp.arange(3) - 1
    col = w_in[None, :] + dw_off[:, None]
    valid = ((col >= 0) & (col < W)).astype(jnp.float32)            # (3, planes*W)
    wd_lane = (wd_rep * valid[None, :, :]).reshape(9, L1)

    # 0/1 row-selection matrix for the stride-H subsampling (stride > 1 only)
    rrow = None
    if stride > 1:
        rrow = (stride * jnp.arange(Hout)[:, None] == jnp.arange(H)[None, :]
                ).astype(jnp.float32)                               # (Hout, H)

    if b_tile is None:
        b_tile = _pick_b_tile(N, H, CinW, L1, Lout, Hout)
    assert N % b_tile == 0, (N, b_tile)
    grid = (N // b_tile,)

    kernel = functools.partial(
        _micro_block_kernel, stride=stride, H=H, W=W, Hout=Hout, planes=planes,
        b_tile=b_tile, act=act, shortcut_mode=shortcut_mode, mm_dtype=mm_dtype)

    inputs = [x_ld, wcat, b1_lane, b2_lane, wd_lane, w3_big, b3_lane]
    in_specs = [pl.BlockSpec((b_tile, H, CinW), lambda n: (n, 0, 0))]
    # Constant weights/biases: constant index_map, so they stay resident across
    # steps.  (pl.Buffered(1) single-buffering skipped: they total << 1 MiB here.)
    in_specs += [_full_spec(a) for a in inputs[1:]]
    if stride > 1:
        inputs.append(rrow)
        in_specs.append(_full_spec(rrow))
    if shortcut_mode == 'project':
        inputs.append(bsc_lane)
        in_specs.append(_full_spec(bsc_lane))

    out_ld = pl.pallas_call(
        kernel,
        out_shape=jax.ShapeDtypeStruct((N, Hout, Lout), jnp.float32),
        grid=grid,
        in_specs=in_specs,
        out_specs=pl.BlockSpec((b_tile, Hout, Lout), lambda n: (n, 0, 0)),
        scratch_shapes=[pltpu.VMEM((b_tile * (H + 2), L1), jnp.float32),   # padded h1
                        pltpu.VMEM((b_tile * Hout, L1), mm_dtype)],        # h2 (bf16)
        compiler_params=pltpu.CompilerParams(
            dimension_semantics=("parallel",)),
    )(*inputs)
    return out_ld


def micro_block_pallas(x_nchw, params, *, stride=1, act='ReLU', b_tile=None,
                       mm_dtype=jnp.bfloat16, bn_eps=1e-5):
    """NCHW in / NCHW out wrapper.  The layout conversion is only needed at
    network boundaries; use micro_block_pallas_lanedense between blocks."""
    x_nchw = x_nchw.astype(jnp.float32)
    N, Cin, H, W = x_nchw.shape
    x_ld = jnp.transpose(x_nchw, (0, 2, 1, 3)).reshape(N, H, Cin * W)
    out_ld = micro_block_pallas_lanedense(
        x_ld, params, W=W, stride=stride, act=act, b_tile=b_tile,
        mm_dtype=mm_dtype, bn_eps=bn_eps)
    _, Hout, Lout = out_ld.shape
    Wout = (W - 1) // stride + 1
    Cout = Lout // Wout
    out = out_ld.reshape(N, Hout, Cout, Wout)
    return jnp.transpose(out, (0, 2, 1, 3))                         # back to NCHW


def _reference_forward(x_nchw, params, *, stride=1, act='ReLU',
                       mm_dtype=jnp.bfloat16, bn_eps=1e-5):
    """Pure-JAX reference mirroring the same BN-folded math and the same
    bf16-operand / f32-accumulate matmuls, for validation."""
    x = jnp.transpose(x_nchw, (0, 2, 3, 1)).astype(jnp.float32)
    N, H, W, Cin = x.shape
    s1, b1 = _fold_bn(*params['bn1'], eps=bn_eps)
    s2, b2 = _fold_bn(*params['bn2'], eps=bn_eps)
    s3, b3 = _fold_bn(*params['bn3'], eps=bn_eps)
    w1 = jnp.transpose(params['conv1_w'][:, :, 0, 0], (1, 0)) * s1[None, :]
    wd = jnp.transpose(params['conv2_w'][:, 0, :, :], (1, 2, 0)) * s2[None, None, :]
    w3 = jnp.transpose(params['conv3_w'][:, :, 0, 0], (1, 0)) * s3[None, :]
    Cout = w3.shape[1]

    def act_fn(v):
        if act == 'HSwish':
            return v * jnp.clip(v + 3.0, 0.0, 6.0) * (1.0 / 6.0)
        return jnp.maximum(v, 0.0)

    x_mm = x.astype(mm_dtype)
    h1 = act_fn(jnp.einsum('nhwc,cp->nhwp', x_mm, w1.astype(mm_dtype),
                           preferred_element_type=jnp.float32) + b1)
    pad = jnp.pad(h1, ((0, 0), (1, 1), (1, 1), (0, 0)))
    Hout = (H - 1) // stride + 1
    Wout = (W - 1) // stride + 1
    acc = jnp.zeros((N, Hout, Wout, h1.shape[-1]), jnp.float32)
    for dh in range(3):
        for dw in range(3):
            acc = acc + pad[:, dh:dh + stride * (Hout - 1) + 1:stride,
                            dw:dw + stride * (Wout - 1) + 1:stride, :] * wd[dh, dw, :]
    h2 = act_fn(acc + b2)
    out = jnp.einsum('nhwp,pc->nhwc', h2.astype(mm_dtype), w3.astype(mm_dtype),
                     preferred_element_type=jnp.float32) + b3
    if stride == 1:
        if Cin != Cout:
            ssc, bsc = _fold_bn(*params['bn_sc'], eps=bn_eps)
            wsc = jnp.transpose(params['conv_sc_w'][:, :, 0, 0], (1, 0)) * ssc[None, :]
            sc = jnp.einsum('nhwc,cp->nhwp', x_mm, wsc.astype(mm_dtype),
                            preferred_element_type=jnp.float32) + bsc
        else:
            sc = x
        out = out + sc
    return jnp.transpose(out, (0, 3, 1, 2))


def _make_params(key, in_planes, out_planes, expansion):
    planes = int(expansion * in_planes)
    ks = jax.random.split(key, 16)

    def bn_params(k, c):
        k1, k2, k3, k4 = jax.random.split(k, 4)
        gamma = 1.0 + 0.1 * jax.random.normal(k1, (c,), jnp.float32)
        beta = 0.1 * jax.random.normal(k2, (c,), jnp.float32)
        mean = 0.1 * jax.random.normal(k3, (c,), jnp.float32)
        var = 1.0 + 0.1 * jnp.abs(jax.random.normal(k4, (c,), jnp.float32))
        return (gamma, beta, mean, var)

    return {
        'conv1_w': 0.2 * jax.random.normal(ks[0], (planes, in_planes, 1, 1), jnp.float32),
        'bn1': bn_params(ks[1], planes),
        'conv2_w': 0.2 * jax.random.normal(ks[2], (planes, 1, 3, 3), jnp.float32),
        'bn2': bn_params(ks[3], planes),
        'conv3_w': 0.2 * jax.random.normal(ks[4], (out_planes, planes, 1, 1), jnp.float32),
        'bn3': bn_params(ks[5], out_planes),
        'conv_sc_w': 0.2 * jax.random.normal(ks[6], (out_planes, in_planes, 1, 1), jnp.float32),
        'bn_sc': bn_params(ks[7], out_planes),
    }


if __name__ == "__main__":
    key = jax.random.PRNGKey(0)
    k1, k2, k3, k4, k5, k6 = jax.random.split(key, 6)
    H = W = 16
    tol = dict(atol=5e-3, rtol=5e-3)   # bf16 matmul operands (mirrored in the reference)

    # Test 1: MicroBlock(in=4, out=8, expansion=2, stride=1, ReLU) — projection shortcut.
    N1 = 2
    x1 = jax.random.normal(k1, (N1, 4, H, W), jnp.float32)
    p1 = _make_params(k2, 4, 8, 2)
    out1 = jax.block_until_ready(micro_block_pallas(x1, p1, stride=1, act='ReLU'))
    ref1 = _reference_forward(x1, p1, stride=1, act='ReLU')
    assert out1.shape == (N1, 8, H, W), out1.shape
    assert jnp.allclose(out1, ref1, **tol), float(jnp.max(jnp.abs(out1 - ref1)))

    # Test 2: MicroBlock(in=8, out=8, expansion=2, stride=1, HSwish) — identity shortcut,
    # N=8 exercises the batched (b_tile=4, grid=2) slab path.
    N2 = 8
    x2 = jax.random.normal(k3, (N2, 8, H, W), jnp.float32)
    p2 = _make_params(k4, 8, 8, 2)
    out2 = jax.block_until_ready(micro_block_pallas(x2, p2, stride=1, act='HSwish'))
    ref2 = _reference_forward(x2, p2, stride=1, act='HSwish')
    assert out2.shape == (N2, 8, H, W), out2.shape
    assert jnp.allclose(out2, ref2, **tol), float(jnp.max(jnp.abs(out2 - ref2)))

    # Test 3: MicroBlock(in=8, out=16, expansion=2, stride=2, HSwish) — no shortcut,
    # exercises the stride-2 path (row/column subsampling).
    N3 = 2
    x3 = jax.random.normal(k5, (N3, 8, H, W), jnp.float32)
    p3 = _make_params(k6, 8, 16, 2)
    out3 = jax.block_until_ready(micro_block_pallas(x3, p3, stride=2, act='HSwish'))
    ref3 = _reference_forward(x3, p3, stride=2, act='HSwish')
    assert out3.shape == (N3, 16, H // 2, W // 2), out3.shape
    assert jnp.allclose(out3, ref3, **tol), float(jnp.max(jnp.abs(out3 - ref3)))

    print("KERNEL_OK")
</pallas_src>

<mosaic_0001>
module attributes {stable_mosaic.version = 11 : i64} {
  func.func @_micro_block_kernel(%arg0: i32, %arg1: memref<1x16x64xf32, #tpu.memory_space<vmem>>, %arg2: memref<64x256xbf16, #tpu.memory_space<vmem>>, %arg3: memref<1x128xf32, #tpu.memory_space<vmem>>, %arg4: memref<1x128xf32, #tpu.memory_space<vmem>>, %arg5: memref<9x128xf32, #tpu.memory_space<vmem>>, %arg6: memref<128x128xbf16, #tpu.memory_space<vmem>>, %arg7: memref<1x128xf32, #tpu.memory_space<vmem>>, %arg8: memref<1x128xf32, #tpu.memory_space<vmem>>, %arg9: memref<1x16x128xf32, #tpu.memory_space<vmem>>, %arg10: memref<18x128xf32, #tpu.memory_space<vmem>>, %arg11: memref<16x128xbf16, #tpu.memory_space<vmem>>) attributes {dimension_semantics = [#tpu.dimension_semantics<parallel>], iteration_bounds = array<i64: 2>, scalar_prefetch = 0 : i64, scratch_operands = 2 : i64, tpu.core_type = #tpu.core_type<tc>, window_params = [{transform_indices = @transform_0, window_bounds = array<i64: 1, 16, 64>}, {pipeline_mode = #tpu.pipeline_mode<synchronous>, transform_indices = @transform_1, window_bounds = array<i64: 64, 256>}, {pipeline_mode = #tpu.pipeline_mode<synchronous>, transform_indices = @transform_2, window_bounds = array<i64: 1, 128>}, {pipeline_mode = #tpu.pipeline_mode<synchronous>, transform_indices = @transform_3, window_bounds = array<i64: 1, 128>}, {pipeline_mode = #tpu.pipeline_mode<synchronous>, transform_indices = @transform_4, window_bounds = array<i64: 9, 128>}, {pipeline_mode = #tpu.pipeline_mode<synchronous>, transform_indices = @transform_5, window_bounds = array<i64: 128, 128>}, {pipeline_mode = #tpu.pipeline_mode<synchronous>, transform_indices = @transform_6, window_bounds = array<i64: 1, 128>}, {pipeline_mode = #tpu.pipeline_mode<synchronous>, transform_indices = @transform_7, window_bounds = array<i64: 1, 128>}, {transform_indices = @transform_8, window_bounds = array<i64: 1, 16, 128>}]} {
    %c0 = arith.constant 0 : index
    %c0_0 = arith.constant 0 : index
    %c0_1 = arith.constant 0 : index
    %0 = vector.load %arg1[%c0, %c0_0, %c0_1] : memref<1x16x64xf32, #tpu.memory_space<vmem>>, vector<1x16x64xf32>
    %1 = vector.shape_cast %0 : vector<1x16x64xf32> to vector<16x64xf32>
    %2 = arith.truncf %1 : vector<16x64xf32> to vector<16x64xbf16>
    %c0_2 = arith.constant 0 : index
    %c0_3 = arith.constant 0 : index
    %3 = vector.load %arg2[%c0_2, %c0_3] : memref<64x256xbf16, #tpu.memory_space<vmem>>, vector<64x256xbf16>
    %cst = arith.constant dense<0.000000e+00> : vector<16x256xf32>
    %4 = tpu.matmul %2, %3, %cst {dimension_numbers = #tpu.dot_dimension_numbers<[1], [0], [0], [1], [0, 0, 1, 1], [], []>} : vector<16x64xbf16>, vector<64x256xbf16>, vector<16x256xf32> -> vector<16x256xf32>
    %5 = vector.extract_strided_slice %4 {offsets = [0, 0], sizes = [16, 128], strides = [1, 1]} : vector<16x256xf32> to vector<16x128xf32>
    %c0_4 = arith.constant 0 : index
    %c0_5 = arith.constant 0 : index
    %6 = vector.load %arg3[%c0_4, %c0_5] : memref<1x128xf32, #tpu.memory_space<vmem>>, vector<1x128xf32>
    %7 = vector.broadcast %6 : vector<1x128xf32> to vector<16x128xf32>
    %8 = arith.addf %5, %7 : vector<16x128xf32>
    %cst_6 = arith.constant 0.000000e+00 : f32
    %9 = vector.broadcast %cst_6 : f32 to vector<16x128xf32>
    %10 = arith.maximumf %8, %9 : vector<16x128xf32>
    %cst_7 = arith.constant 0.000000e+00 : f32
    %11 = vector.broadcast %cst_7 : f32 to vector<1x128xf32>
    %c0_8 = arith.constant 0 : index
    %c0_9 = arith.constant 0 : index
    %12 = vector.load %arg10[%c0_8, %c0_9] : memref<18x128xf32, #tpu.memory_space<vmem>>, vector<1x128xf32>
    tpu.vector_store %arg10[%c0_8, %c0_9], %11 {strides = array<i32>} : memref<18x128xf32, #tpu.memory_space<vmem>>, vector<1x128xf32>,
    %c17 = arith.constant 17 : index
    %c0_10 = arith.constant 0 : index
    %13 = vector.load %arg10[%c17, %c0_10] : memref<18x128xf32, #tpu.memory_space<vmem>>, vector<1x128xf32>
    tpu.vector_store %arg10[%c17, %c0_10], %11 {strides = array<i32>} : memref<18x128xf32, #tpu.memory_space<vmem>>, vector<1x128xf32>,
    %c1 = arith.constant 1 : index
    %c0_11 = arith.constant 0 : index
    %14 = vector.load %arg10[%c1, %c0_11] : memref<18x128xf32, #tpu.memory_space<vmem>>, vector<16x128xf32>
    tpu.vector_store %arg10[%c1, %c0_11], %10 {strides = array<i32>} : memref<18x128xf32, #tpu.memory_space<vmem>>, vector<16x128xf32>,
    %c0_12 = arith.constant 0 : index
    %c0_13 = arith.constant 0 : index
    %15 = vector.load %arg10[%c0_12, %c0_13] : memref<18x128xf32, #tpu.memory_space<vmem>>, vector<16x128xf32>
    %c1_i32 = arith.constant 1 : i32
    %16 = tpu.dynamic_rotate %15 by %c1_i32 dim 1 : vector<16x128xf32>, i32 -> vector<16x128xf32>
    %c0_14 = arith.constant 0 : index
    %c0_15 = arith.constant 0 : index
    %17 = vector.load %arg5[%c0_14, %c0_15] : memref<9x128xf32, #tpu.memory_space<vmem>>, vector<1x128xf32>
    %18 = vector.shape_cast %17 : vector<1x128xf32> to vector<128xf32>
    %19 = vector.shape_cast %18 : vector<128xf32> to vector<1x128xf32>
    %20 = vector.broadcast %19 : vector<1x128xf32> to vector<16x128xf32>
    %21 = arith.mulf %16, %20 : vector<16x128xf32>
    %c1_16 = arith.constant 1 : index
    %c0_17 = arith.constant 0 : index
    %22 = vector.load %arg5[%c1_16, %c0_17] : memref<9x128xf32, #tpu.memory_space<vmem>>, vector<1x128xf32>
    %23 = vector.shape_cast %22 : vector<1x128xf32> to vector<128xf32>
    %24 = vector.shape_cast %23 : vector<128xf32> to vector<1x128xf32>
    %25 = vector.broadcast %24 : vector<1x128xf32> to vector<16x128xf32>
    %26 = arith.mulf %15, %25 : vector<16x128xf32>
    %27 = arith.addf %21, %26 : vector<16x128xf32>
    %c127_i32 = arith.constant 127 : i32
    %28 = tpu.dynamic_rotate %15 by %c127_i32 dim 1 : vector<16x128xf32>, i32 -> vector<16x128xf32>
    %c2 = arith.constant 2 : index
    %c0_18 = arith.constant 0 : index
    %29 = vector.load %arg5[%c2, %c0_18] : memref<9x128xf32, #tpu.memory_space<vmem>>, vector<1x128xf32>
    %30 = vector.shape_cast %29 : vector<1x128xf32> to vector<128xf32>
    %31 = vector.shape_cast %30 : vector<128xf32> to vector<1x128xf32>
    %32 = vector.broadcast %31 : vector<1x128xf32> to vector<16x128xf32>
    %33 = arith.mulf %28, %32 : vector<16x128xf32>
    %34 = arith.addf %27, %33 : vector<16x128xf32>
    %c1_19 = arith.constant 1 : index
    %c0_20 = arith.constant 0 : index
    %35 = vector.load %arg10[%c1_19, %c0_20] : memref<18x128xf32, #tpu.memory_space<vmem>>, vector<16x128xf32>
    %c1_i32_21 = arith.constant 1 : i32
    %36 = tpu.dynamic_rotate %35 by %c1_i32_21 dim 1 : vector<16x128xf32>, i32 -> vector<16x128xf32>
    %c3 = arith.constant 3 : index
    %c0_22 = arith.constant 0 : index
    %37 = vector.load %arg5[%c3, %c0_22] : memref<9x128xf32, #tpu.memory_space<vmem>>, vector<1x128xf32>
    %38 = vector.shape_cast %37 : vector<1x128xf32> to vector<128xf32>
    %39 = vector.shape_cast %38 : vector<128xf32> to vector<1x128xf32>
    %40 = vector.broadcast %39 : vector<1x128xf32> to vector<16x128xf32>
    %41 = arith.mulf %36, %40 : vector<16x128xf32>
    %42 = arith.addf %34, %41 : vector<16x128xf32>
    %c4 = arith.constant 4 : index
    %c0_23 = arith.constant 0 : index
    %43 = vector.load %arg5[%c4, %c0_23] : memref<9x128xf32, #tpu.memory_space<vmem>>, vector<1x128xf32>
    %44 = vector.shape_cast %43 : vector<1x128xf32> to vector<128xf32>
    %45 = vector.shape_cast %44 : vector<128xf32> to vector<1x128xf32>
    %46 = vector.broadcast %45 : vector<1x128xf32> to vector<16x128xf32>
    %47 = arith.mulf %35, %46 : vector<16x128xf32>
    %48 = arith.addf %42, %47 : vector<16x128xf32>
    %c127_i32_24 = arith.constant 127 : i32
    %49 = tpu.dynamic_rotate %35 by %c127_i32_24 dim 1 : vector<16x128xf32>, i32 -> vector<16x128xf32>
    %c5 = arith.constant 5 : index
    %c0_25 = arith.constant 0 : index
    %50 = vector.load %arg5[%c5, %c0_25] : memref<9x128xf32, #tpu.memory_space<vmem>>, vector<1x128xf32>
    %51 = vector.shape_cast %50 : vector<1x128xf32> to vector<128xf32>
    %52 = vector.shape_cast %51 : vector<128xf32> to vector<1x128xf32>
    %53 = vector.broadcast %52 : vector<1x128xf32> to vector<16x128xf32>
    %54 = arith.mulf %49, %53 : vector<16x128xf32>
    %55 = arith.addf %48, %54 : vector<16x128xf32>
    %c2_26 = arith.constant 2 : index
    %c0_27 = arith.constant 0 : index
    %56 = vector.load %arg10[%c2_26, %c0_27] : memref<18x128xf32, #tpu.memory_space<vmem>>, vector<16x128xf32>
    %c1_i32_28 = arith.constant 1 : i32
    %57 = tpu.dynamic_rotate %56 by %c1_i32_28 dim 1 : vector<16x128xf32>, i32 -> vector<16x128xf32>
    %c6 = arith.constant 6 : index
    %c0_29 = arith.constant 0 : index
    %58 = vector.load %arg5[%c6, %c0_29] : memref<9x128xf32, #tpu.memory_space<vmem>>, vector<1x128xf32>
    %59 = vector.shape_cast %58 : vector<1x128xf32> to vector<128xf32>
    %60 = vector.shape_cast %59 : vector<128xf32> to vector<1x128xf32>
    %61 = vector.broadcast %60 : vector<1x128xf32> to vector<16x128xf32>
    %62 = arith.mulf %57, %61 : vector<16x128xf32>
    %63 = arith.addf %55, %62 : vector<16x128xf32>
    %c7 = arith.constant 7 : index
    %c0_30 = arith.constant 0 : index
    %64 = vector.load %arg5[%c7, %c0_30] : memref<9x128xf32, #tpu.memory_space<vmem>>, vector<1x128xf32>
    %65 = vector.shape_cast %64 : vector<1x128xf32> to vector<128xf32>
    %66 = vector.shape_cast %65 : vector<128xf32> to vector<1x128xf32>
    %67 = vector.broadcast %66 : vector<1x128xf32> to vector<16x128xf32>
    %68 = arith.mulf %56, %67 : vector<16x128xf32>
    %69 = arith.addf %63, %68 : vector<16x128xf32>
    %c127_i32_31 = arith.constant 127 : i32
    %70 = tpu.dynamic_rotate %56 by %c127_i32_31 dim 1 : vector<16x128xf32>, i32 -> vector<16x128xf32>
    %c8 = arith.constant 8 : index
    %c0_32 = arith.constant 0 : index
    %71 = vector.load %arg5[%c8, %c0_32] : memref<9x128xf32, #tpu.memory_space<vmem>>, vector<1x128xf32>
    %72 = vector.shape_cast %71 : vector<1x128xf32> to vector<128xf32>
    %73 = vector.shape_cast %72 : vector<128xf32> to vector<1x128xf32>
    %74 = vector.broadcast %73 : vector<1x128xf32> to vector<16x128xf32>
    %75 = arith.mulf %70, %74 : vector<16x128xf32>
    %76 = arith.addf %69, %75 : vector<16x128xf32>
    %c0_33 = arith.constant 0 : index
    %c0_34 = arith.constant 0 : index
    %77 = vector.load %arg4[%c0_33, %c0_34] : memref<1x128xf32, #tpu.memory_space<vmem>>, vector<1x128xf32>
    %78 = vector.broadcast %77 : vector<1x128xf32> to vector<16x128xf32>
    %79 = arith.addf %76, %78 : vector<16x128xf32>
    %cst_35 = arith.constant 0.000000e+00 : f32
    %80 = vector.broadcast %cst_35 : f32 to vector<16x128xf32>
    %81 = arith.maximumf %79, %80 : vector<16x128xf32>
    %82 = arith.truncf %81 : vector<16x128xf32> to vector<16x128xbf16>
    %c0_36 = arith.constant 0 : index
    %c0_37 = arith.constant 0 : index
    %83 = vector.load %arg11[%c0_36, %c0_37] : memref<16x128xbf16, #tpu.memory_space<vmem>>, vector<16x128xbf16>
    tpu.vector_store %arg11[%c0_36, %c0_37], %82 {strides = array<i32>} : memref<16x128xbf16, #tpu.memory_space<vmem>>, vector<16x128xbf16>,
    %c0_38 = arith.constant 0 : index
    %c0_39 = arith.constant 0 : index
    %84 = vector.load %arg11[%c0_38, %c0_39] : memref<16x128xbf16, #tpu.memory_space<vmem>>, vector<16x128xbf16>
    %c0_40 = arith.constant 0 : index
    %c0_41 = arith.constant 0 : index
    %85 = vector.load %arg6[%c0_40, %c0_41] : memref<128x128xbf16, #tpu.memory_space<vmem>>, vector<128x128xbf16>
    %cst_42 = arith.constant dense<0.000000e+00> : vector<16x128xf32>
    %86 = tpu.matmul %84, %85, %cst_42 {dimension_numbers = #tpu.dot_dimension_numbers<[1], [0], [0], [1], [0, 0, 1, 1], [], []>} : vector<16x128xbf16>, vector<128x128xbf16>, vector<16x128xf32> -> vector<16x128xf32>
    %c0_43 = arith.constant 0 : index
    %c0_44 = arith.constant 0 : index
    %87 = vector.load %arg7[%c0_43, %c0_44] : memref<1x128xf32, #tpu.memory_space<vmem>>, vector<1x128xf32>
    %88 = vector.broadcast %87 : vector<1x128xf32> to vector<16x128xf32>
    %89 = arith.addf %86, %88 : vector<16x128xf32>
    %90 = vector.extract_strided_slice %4 {offsets = [0, 128], sizes = [16, 128], strides = [1, 1]} : vector<16x256xf32> to vector<16x128xf32>
    %c0_45 = arith.constant 0 : index
    %c0_46 = arith.constant 0 : index
    %91 = vector.load %arg8[%c0_45, %c0_46] : memref<1x128xf32, #tpu.memory_space<vmem>>, vector<1x128xf32>
    %92 = vector.broadcast %91 : vector<1x128xf32> to vector<16x128xf32>
    %93 = arith.addf %90, %92 : vector<16x128xf32>
    %94 = arith.addf %89, %93 : vector<16x128xf32>
    %95 = vector.shape_cast %94 : vector<16x128xf32> to vector<1x16x128xf32>
    %c0_47 = arith.constant 0 : index
    %c0_48 = arith.constant 0 : index
    %c0_49 = arith.constant 0 : index
    %96 = vector.load %arg9[%c0_47, %c0_48, %c0_49] : memref<1x16x128xf32, #tpu.memory_space<vmem>>, vector<1x16x128xf32>
    tpu.vector_store %arg9[%c0_47, %c0_48, %c0_49], %95 {strides = array<i32>} : memref<1x16x128xf32, #tpu.memory_space<vmem>>, vector<1x16x128xf32>,
    return
  }
  func.func @transform_0(%arg0: i32) -> (i32, i32, i32) {
    %c0_i32 = arith.constant 0 : i32
    %c0_i32_0 = arith.constant 0 : i32
    %c0_i32_1 = arith.constant 0 : i32
    return %arg0, %c0_i32, %c0_i32_0 : i32, i32, i32
  }
  func.func @transform_1(%arg0: i32) -> (i32, i32) {
    %c0_i32 = arith.constant 0 : i32
    %c0_i32_0 = arith.constant 0 : i32
    %c0_i32_1 = arith.constant 0 : i32
    return %c0_i32, %c0_i32_0 : i32, i32
  }
  func.func @transform_2(%arg0: i32) -> (i32, i32) {
    %c0_i32 = arith.constant 0 : i32
    %c0_i32_0 = arith.constant 0 : i32
    %c0_i32_1 = arith.constant 0 : i32
    return %c0_i32, %c0_i32_0 : i32, i32
  }
  func.func @transform_3(%arg0: i32) -> (i32, i32) {
    %c0_i32 = arith.constant 0 : i32
    %c0_i32_0 = arith.constant 0 : i32
    %c0_i32_1 = arith.constant 0 : i32
    return %c0_i32, %c0_i32_0 : i32, i32
  }
  func.func @transform_4(%arg0: i32) -> (i32, i32) {
    %c0_i32 = arith.constant 0 : i32
    %c0_i32_0 = arith.constant 0 : i32
    %c0_i32_1 = arith.constant 0 : i32
    return %c0_i32, %c0_i32_0 : i32, i32
  }
  func.func @transform_5(%arg0: i32) -> (i32, i32) {
    %c0_i32 = arith.constant 0 : i32
    %c0_i32_0 = arith.constant 0 : i32
    %c0_i32_1 = arith.constant 0 : i32
    return %c0_i32, %c0_i32_0 : i32, i32
  }
  func.func @transform_6(%arg0: i32) -> (i32, i32) {
    %c0_i32 = arith.constant 0 : i32
    %c0_i32_0 = arith.constant 0 : i32
    %c0_i32_1 = arith.constant 0 : i32
    return %c0_i32, %c0_i32_0 : i32, i32
  }
  func.func @transform_7(%arg0: i32) -> (i32, i32) {
    %c0_i32 = arith.constant 0 : i32
    %c0_i32_0 = arith.constant 0 : i32
    %c0_i32_1 = arith.constant 0 : i32
    return %c0_i32, %c0_i32_0 : i32, i32
  }
  func.func @transform_8(%arg0: i32) -> (i32, i32, i32) {
    %c0_i32 = arith.constant 0 : i32
    %c0_i32_0 = arith.constant 0 : i32
    %c0_i32_1 = arith.constant 0 : i32
    return %arg0, %c0_i32, %c0_i32_0 : i32, i32, i32
  }
}

</mosaic_0001>

<llo_original>
// kernel: tpu_custom_call.1
$region0: #{tpu_custom_call.1}
  #allocation0 [shape = 'u32[]', space=smem, size = 0x4, offset = 0x4, fixed_abs, tag = 'smem constant byte address 0x4 - core index']
  #allocation1 [shape = 'u32[144,128]{1,0:T(1,128)}', space=vmem, size = 0x12000, scoped, tag = 'internal scratch']
  #allocation2 [shape = 'f32[18,128]{1,0:T(8,128)}', space=vmem, size = 0x3000, scoped, tag = 'scratch operand']
  #allocation3 [shape = 'bf16[16,128]{1,0:T(16,128)(2,1)}', space=vmem, size = 0x1000, scoped, tag = 'scratch operand']
  %s0 = inlined_call_operand.hbm [shape: f32[2,16,64], index: 0, kind: input, shape index: {}]
  %s1 = inlined_call_operand.hbm [shape: bf16[64,256], index: 1, kind: input, shape index: {}]
  %s2 = inlined_call_operand.vmem [shape: f32[1,128], index: 2, kind: input, shape index: {}]
  %s3 = inlined_call_operand.vmem [shape: f32[1,128], index: 3, kind: input, shape index: {}]
  %s4 = inlined_call_operand.hbm [shape: f32[9,128], index: 4, kind: input, shape index: {}]
  %s5 = inlined_call_operand.hbm [shape: bf16[128,128], index: 5, kind: input, shape index: {}]
  %s6 = inlined_call_operand.vmem [shape: f32[1,128], index: 6, kind: input, shape index: {}]
  %s7 = inlined_call_operand.vmem [shape: f32[1,128], index: 7, kind: input, shape index: {}]
  %s8 = inlined_call_operand.hbm [shape: f32[2,16,128], index: 8, kind: output, shape index: {}]
  %s9 = sld [smem:[#allocation0]]
  $region81: #{tpu_custom_call.1} parent=0
    _
  %s11 = ssub.s32 1, %s9
  %s12 = scalar_select 0, %s11, %s9
  $region1: #{tpu_custom_call.1} parent=0
    #allocation4 [shape = 'u8[16384]{0}', space=vmem, size = 0x4000, scoped, tag = 'input window, operand 0']
    #allocation5 [shape = 's32[2]{0}', space=sflag, size = 0x8, scoped, tag = 'scoped memory for tpu_custom_call.1']
    #allocation6 [shape = 's32[2]{0}', space=sflag, size = 0x8, scoped, tag = 'scoped memory for tpu_custom_call.1']
    #allocation7 [shape = 'u8[32768]{0}', space=vmem, size = 0x8000, scoped, tag = 'input window, operand 1, single buffered']
    #allocation8 [shape = 's32[1]{0}', space=sflag, size = 0x4, scoped, tag = 'scoped memory for tpu_custom_call.1']
    #allocation9 [shape = 'u8[8192]{0}', space=vmem, size = 0x2000, scoped, tag = 'input window, operand 4, single buffered']
    #allocation10 [shape = 'u8[32768]{0}', space=vmem, size = 0x8000, scoped, tag = 'input window, operand 5, single buffered']
    #allocation11 [shape = 's32[1]{0}', space=sflag, size = 0x4, scoped, tag = 'scoped memory for tpu_custom_call.1']
    #allocation12 [shape = 'u8[16384]{0}', space=vmem, size = 0x4000, scoped, tag = 'output window, operand 0']
    %13 = vsyncpa [#allocation5], 0
    %s14 = scalar_lea.sflag [#allocation5], 1
    %15 = vsyncpa %s14, 0
    %16 = vsyncpa [#allocation8], 0
    %17 = vsyncpa [#allocation11], 0
    %18 = vsyncpa [#allocation6], 0
    %s19 = scalar_lea.sflag [#allocation6], 1
    %20 = vsyncpa %s19, 0
    loop: start=0, step=1, limit=4
    $region2: #{tpu_custom_call.1} parent=1 // loop_pre_header
      _
    $region3: #{tpu_custom_call.1} parent=1 // loop_header
      %s22 = sphi 0, %s26
      %p23 = scmp.ge.s32.totalorder %s22, 4
      %s32 = sphi 0, %s34
      %s35 = sphi 0, %s32
      %s36 = sphi 0, %s35
      %s52 = sphi 0, %s36
      %s56 = sphi 0, %s56
      %s58 = sphi 0, %s56
      %s59 = sphi 0, %s58
      %s73 = sphi 0, %s59
      %s77 = sphi 0, %s77
      %s79 = sphi 0, %s77
      %s80 = sphi 0, %s79
      %s94 = sphi 0, %s80
      %s98 = sphi 0, %s98
      %s100 = sphi 0, %s98
      %s101 = sphi 0, %s100
      %s115 = sphi 0, %s101
      %s119 = sphi 0, %s119
      %s121 = sphi 0, %s119
      %s122 = sphi 0, %s121
      %s136 = sphi 0, %s122
      %s140 = sphi 0, %s140
      %s142 = sphi 0, %s140
      %s143 = sphi 0, %s142
      %s157 = sphi 0, %s143
      %s161 = sphi 0, %s161
      %s163 = sphi 0, %s161
      %s164 = sphi 0, %s163
      %s178 = sphi 0, %s164
      %s182 = sphi 0, %s182
      %s184 = sphi 0, %s182
      %s185 = sphi 0, %s184
      %s199 = sphi 0, %s185
      %s205 = sphi 0, %s207
      %s208 = sphi 0, %s205
      %s209 = sphi 0, %s208
      %s225 = sphi 0, %s209
    $region4: #{tpu_custom_call.1} parent=1 // loop_header_branch
      %25 = sbr.rel (%p23) target = $region8
    $region5: #{tpu_custom_call.1} parent=1 // loop_body
      %s27 = ssub.s32 %s22, 1
      %s28 = ssub.s32 %s22, 2
      %s29 = sadd.s32 %s22, 1
      %s30 = ssub.s32 %s22, %s29
      %p31 = scmp.eq.s32.totalorder %s30, 0
      %s33 = sadd.s32 %s32, 1
      %s34 = scalar_select %p31, %s32, %s33
      %p37 = pneg %p31
      %p38 = scmp.eq.s32.totalorder %s22, 1
      %p39 = por %p37, %p38
      %p40 = scmp.ne.s32.totalorder %s32, %s35
      %p41 = scmp.eq.s32.totalorder %s22, 0
      %p42 = por %p40, %p41
      %p43 = scmp.ne.s32.totalorder %s32, %s35
      %p44 = scmp.eq.s32.totalorder %s27, 1
      %p45 = por %p43, %p44
      %p46 = scmp.ne.s32.totalorder %s35, %s36
      %p47 = scmp.eq.s32.totalorder %s27, 0
      %p48 = por %p46, %p47
      %p49 = scmp.ne.s32.totalorder %s35, %s36
      %p50 = scmp.eq.s32.totalorder %s28, 1
      %p51 = por %p49, %p50
      %p53 = scmp.ne.s32.totalorder %s36, %s52
      %p54 = scmp.eq.s32.totalorder %s28, 0
      %p55 = por %p53, %p54
      %s57 = sadd.s32 %s56, 1
      %p60 = scmp.eq.s32.totalorder %s22, 1
      %p61 = scmp.ne.s32.totalorder %s56, %s58
      %p62 = scmp.eq.s32.totalorder %s22, 0
      %p63 = por %p61, %p62
      %p64 = scmp.ne.s32.totalorder %s56, %s58
      %p65 = scmp.eq.s32.totalorder %s27, 1
      %p66 = por %p64, %p65
      %p67 = scmp.ne.s32.totalorder %s58, %s59
      %p68 = scmp.eq.s32.totalorder %s27, 0
      %p69 = por %p67, %p68
      %p70 = scmp.ne.s32.totalorder %s58, %s59
      %p71 = scmp.eq.s32.totalorder %s28, 1
      %p72 = por %p70, %p71
      %p74 = scmp.ne.s32.totalorder %s59, %s73
      %p75 = scmp.eq.s32.totalorder %s28, 0
      %p76 = por %p74, %p75
      %s78 = sadd.s32 %s77, 1
      %p81 = scmp.eq.s32.totalorder %s22, 1
      %p82 = scmp.ne.s32.totalorder %s77, %s79
      %p83 = scmp.eq.s32.totalorder %s22, 0
      %p84 = por %p82, %p83
      %p85 = scmp.ne.s32.totalorder %s77, %s79
      %p86 = scmp.eq.s32.totalorder %s27, 1
      %p87 = por %p85, %p86
      %p88 = scmp.ne.s32.totalorder %s79, %s80
      %p89 = scmp.eq.s32.totalorder %s27, 0
      %p90 = por %p88, %p89
      %p91 = scmp.ne.s32.totalorder %s79, %s80
      %p92 = scmp.eq.s32.totalorder %s28, 1
      %p93 = por %p91, %p92
      %p95 = scmp.ne.s32.totalorder %s80, %s94
      %p96 = scmp.eq.s32.totalorder %s28, 0
      %p97 = por %p95, %p96
      %s99 = sadd.s32 %s98, 1
      %p102 = scmp.eq.s32.totalorder %s22, 1
      %p103 = scmp.ne.s32.totalorder %s98, %s100
      %p104 = scmp.eq.s32.totalorder %s22, 0
      %p105 = por %p103, %p104
      %p106 = scmp.ne.s32.totalorder %s98, %s100
      %p107 = scmp.eq.s32.totalorder %s27, 1
      %p108 = por %p106, %p107
      %p109 = scmp.ne.s32.totalorder %s100, %s101
      %p110 = scmp.eq.s32.totalorder %s27, 0
      %p111 = por %p109, %p110
      %p112 = scmp.ne.s32.totalorder %s100, %s101
      %p113 = scmp.eq.s32.totalorder %s28, 1
      %p114 = por %p112, %p113
      %p116 = scmp.ne.s32.totalorder %s101, %s115
      %p117 = scmp.eq.s32.totalorder %s28, 0
      %p118 = por %p116, %p117
      %s120 = sadd.s32 %s119, 1
      %p123 = scmp.eq.s32.totalorder %s22, 1
      %p124 = scmp.ne.s32.totalorder %s119, %s121
      %p125 = scmp.eq.s32.totalorder %s22, 0
      %p126 = por %p124, %p125
      %p127 = scmp.ne.s32.totalorder %s119, %s121
      %p128 = scmp.eq.s32.totalorder %s27, 1
      %p129 = por %p127, %p128
      %p130 = scmp.ne.s32.totalorder %s121, %s122
      %p131 = scmp.eq.s32.totalorder %s27, 0
      %p132 = por %p130, %p131
      %p133 = scmp.ne.s32.totalorder %s121, %s122
      %p134 = scmp.eq.s32.totalorder %s28, 1
      %p135 = por %p133, %p134
      %p137 = scmp.ne.s32.totalorder %s122, %s136
      %p138 = scmp.eq.s32.totalorder %s28, 0
      %p139 = por %p137, %p138
      %s141 = sadd.s32 %s140, 1
      %p144 = scmp.eq.s32.totalorder %s22, 1
      %p145 = scmp.ne.s32.totalorder %s140, %s142
      %p146 = scmp.eq.s32.totalorder %s22, 0
      %p147 = por %p145, %p146
      %p148 = scmp.ne.s32.totalorder %s140, %s142
      %p149 = scmp.eq.s32.totalorder %s27, 1
      %p150 = por %p148, %p149
      %p151 = scmp.ne.s32.totalorder %s142, %s143
      %p152 = scmp.eq.s32.totalorder %s27, 0
      %p153 = por %p151, %p152
      %p154 = scmp.ne.s32.totalorder %s142, %s143
      %p155 = scmp.eq.s32.totalorder %s28, 1
      %p156 = por %p154, %p155
      %p158 = scmp.ne.s32.totalorder %s143, %s157
      %p159 = scmp.eq.s32.totalorder %s28, 0
      %p160 = por %p158, %p159
      %s162 = sadd.s32 %s161, 1
      %p165 = scmp.eq.s32.totalorder %s22, 1
      %p166 = scmp.ne.s32.totalorder %s161, %s163
      %p167 = scmp.eq.s32.totalorder %s22, 0
      %p168 = por %p166, %p167
      %p169 = scmp.ne.s32.totalorder %s161, %s163
      %p170 = scmp.eq.s32.totalorder %s27, 1
      %p171 = por %p169, %p170
      %p172 = scmp.ne.s32.totalorder %s163, %s164
      %p173 = scmp.eq.s32.totalorder %s27, 0
      %p174 = por %p172, %p173
      %p175 = scmp.ne.s32.totalorder %s163, %s164
      %p176 = scmp.eq.s32.totalorder %s28, 1
      %p177 = por %p175, %p176
      %p179 = scmp.ne.s32.totalorder %s164, %s178
      %p180 = scmp.eq.s32.totalorder %s28, 0
      %p181 = por %p179, %p180
      %s183 = sadd.s32 %s182, 1
      %p186 = scmp.eq.s32.totalorder %s22, 1
      %p187 = scmp.ne.s32.totalorder %s182, %s184
      %p188 = scmp.eq.s32.totalorder %s22, 0
      %p189 = por %p187, %p188
      %p190 = scmp.ne.s32.totalorder %s182, %s184
      %p191 = scmp.eq.s32.totalorder %s27, 1
      %p192 = por %p190, %p191
      %p193 = scmp.ne.s32.totalorder %s184, %s185
      %p194 = scmp.eq.s32.totalorder %s27, 0
      %p195 = por %p193, %p194
      %p196 = scmp.ne.s32.totalorder %s184, %s185
      %p197 = scmp.eq.s32.totalorder %s28, 1
      %p198 = por %p196, %p197
      %p200 = scmp.ne.s32.totalorder %s185, %s199
      %p201 = scmp.eq.s32.totalorder %s28, 0
      %p202 = por %p200, %p201
      %s203 = ssub.s32 %s22, %s29
      %p204 = scmp.eq.s32.totalorder %s203, 0
      %s206 = sadd.s32 %s205, 1
      %s207 = scalar_select %p204, %s205, %s206
      %p210 = pneg %p204
      %p211 = scmp.eq.s32.totalorder %s22, 1
      %p212 = por %p210, %p211
      %p213 = scmp.ne.s32.totalorder %s205, %s208
      %p214 = scmp.eq.s32.totalorder %s22, 0
      %p215 = por %p213, %p214
      %p216 = scmp.ne.s32.totalorder %s205, %s208
      %p217 = scmp.eq.s32.totalorder %s27, 1
      %p218 = por %p216, %p217
      %p219 = scmp.ne.s32.totalorder %s208, %s209
      %p220 = scmp.eq.s32.totalorder %s27, 0
      %p221 = por %p219, %p220
      %p222 = scmp.ne.s32.totalorder %s208, %s209
      %p223 = scmp.eq.s32.totalorder %s28, 1
      %p224 = por %p222, %p223
      %p226 = scmp.ne.s32.totalorder %s209, %s225
      %p227 = scmp.eq.s32.totalorder %s28, 0
      %p228 = por %p226, %p227
      %p229 = scmp.le.s32.totalorder 1, %s22
      %p230 = scmp.lt.s32.totalorder %s22, 3
      %p231 = pnand %p229, %p230
      %p232 = pneg %p231
      // Predicated region
      $region9: #{tpu_custom_call.1} parent=5 // pred_check
        _
      $region10: #{tpu_custom_call.1} parent=5 // pred_check_branch
        %234 = sbr.rel (%p231) target = $region12
      $region11: #{tpu_custom_call.1} parent=5 // pred_region
        %s235 = ssub.s32 %s22, 1
        // Predicated region
        $region13: #{tpu_custom_call.1} parent=11 // pred_check
          %p236 = pneg %p69
        $region14: #{tpu_custom_call.1} parent=11 // pred_check_branch
          %238 = sbr.rel (%p236) target = $region16
        $region15: #{tpu_custom_call.1} parent=11 // pred_region
          %s240 = ssub.s32 1024, 1024
          %241 = vsyncadd [#allocation8], %s240
          %s242 = sshll.u32 [#allocation7], 4
          %s243 = int_to_ptr.vmem [resolvable:$true] %s242
          %248 = dma.hbm_to_vmem [thread:$0]  %s1, 1024, %s243, [#allocation8], 128, 128, 8
        $region16: #{tpu_custom_call.1} parent=11 // pred_fallthru
          _
        // Predicated region
        $region17: #{tpu_custom_call.1} parent=11 // pred_check
          %p249 = pneg %p90
        $region18: #{tpu_custom_call.1} parent=11 // pred_check_branch
          %251 = sbr.rel (%p249) target = $region20
        $region19: #{tpu_custom_call.1} parent=11 // pred_region
          _
        $region20: #{tpu_custom_call.1} parent=11 // pred_fallthru
          _
        // Predicated region
        $region21: #{tpu_custom_call.1} parent=11 // pred_check
          %p252 = pneg %p111
        $region22: #{tpu_custom_call.1} parent=11 // pred_check_branch
          %254 = sbr.rel (%p252) target = $region24
        $region23: #{tpu_custom_call.1} parent=11 // pred_region
          _
        $region24: #{tpu_custom_call.1} parent=11 // pred_fallthru
          _
        // Predicated region
        $region25: #{tpu_custom_call.1} parent=11 // pred_check
          %p255 = pneg %p132
        $region26: #{tpu_custom_call.1} parent=11 // pred_check_branch
          %257 = sbr.rel (%p255) target = $region28
        $region27: #{tpu_custom_call.1} parent=11 // pred_region
          %s259 = ssub.s32 256, 256
          %260 = vsyncadd [#allocation8], %s259
          %s261 = sshll.u32 [#allocation9], 4
          %s262 = int_to_ptr.vmem [resolvable:$true] %s261
          %267 = dma.hbm_to_vmem [thread:$0]  %s4, 256, %s262, [#allocation8], 128, 128, 8
        $region28: #{tpu_custom_call.1} parent=11 // pred_fallthru
          _
        // Predicated region
        $region29: #{tpu_custom_call.1} parent=11 // pred_check
          %p268 = pneg %p153
        $region30: #{tpu_custom_call.1} parent=11 // pred_check_branch
          %270 = sbr.rel (%p268) target = $region32
        $region31: #{tpu_custom_call.1} parent=11 // pred_region
          %s272 = ssub.s32 1024, 1024
          %273 = vsyncadd [#allocation11], %s272
          %s274 = sshll.u32 [#allocation10], 4
          %s275 = int_to_ptr.vmem [resolvable:$true] %s274
          %280 = dma.hbm_to_vmem [thread:$0]  %s5, 1024, %s275, [#allocation11], 64, 64, 4
        $region32: #{tpu_custom_call.1} parent=11 // pred_fallthru
          _
        // Predicated region
        $region33: #{tpu_custom_call.1} parent=11 // pred_check
          %p281 = pneg %p174
        $region34: #{tpu_custom_call.1} parent=11 // pred_check_branch
          %283 = sbr.rel (%p281) target = $region36
        $region35: #{tpu_custom_call.1} parent=11 // pred_region
          _
        $region36: #{tpu_custom_call.1} parent=11 // pred_fallthru
          _
        // Predicated region
        $region37: #{tpu_custom_call.1} parent=11 // pred_check
          %p284 = pneg %p195
        $region38: #{tpu_custom_call.1} parent=11 // pred_check_branch
          %286 = sbr.rel (%p284) target = $region40
        $region39: #{tpu_custom_call.1} parent=11 // pred_region
          _
        $region40: #{tpu_custom_call.1} parent=11 // pred_fallthru
          _
      $region12: #{tpu_custom_call.1} parent=5 // pred_fallthru
        _
      %p287 = scmp.lt.s32.totalorder %s22, 2
      // Predicated region
      $region41: #{tpu_custom_call.1} parent=5 // pred_check
        %p288 = pneg %p287
      $region42: #{tpu_custom_call.1} parent=5 // pred_check_branch
        %290 = sbr.rel (%p288) target = $region44
      $region43: #{tpu_custom_call.1} parent=5 // pred_region
        // Predicated region
        $region45: #{tpu_custom_call.1} parent=43 // pred_check
          %p291 = pneg %p42
        $region46: #{tpu_custom_call.1} parent=43 // pred_check_branch
          %293 = sbr.rel (%p291) target = $region48
        $region47: #{tpu_custom_call.1} parent=43 // pred_region
          %s294 = sand.u32 %s32, 1
          %s295 = scalar_lea.sflag [#allocation5], %s294
          %s296 = sand.u32 %s32, 1
          %s297 = smul.addr %s296, 16
          %s298 = scalar_lea.vmem [#allocation4], %s297
          %s300 = ssub.s32 256, 256
          %301 = vsyncadd %s295, %s300
          %s302 = smul.addr %s22, 2
          %s303 = smul.addr %s302, 128
          %s304 = scalar_lea.hbm %s0, %s303
          %s305 = sshll.u32 %s298, 4
          %s306 = int_to_ptr.vmem [resolvable:$true] %s305
          %311 = dma.hbm_to_vmem [thread:$0]  %s304, 256, %s306, %s295, 128, 128, 8
        $region48: #{tpu_custom_call.1} parent=43 // pred_fallthru
          _
      $region44: #{tpu_custom_call.1} parent=5 // pred_fallthru
        _
      %p312 = scmp.le.s32.totalorder 1, %s22
      %p313 = scmp.lt.s32.totalorder %s22, 3
      %p314 = pnand %p312, %p313
      %p315 = pneg %p314
      // Predicated region
      $region49: #{tpu_custom_call.1} parent=5 // pred_check
        _
      $region50: #{tpu_custom_call.1} parent=5 // pred_check_branch
        %317 = sbr.rel (%p314) target = $region52
      $region51: #{tpu_custom_call.1} parent=5 // pred_region
        %s318 = ssub.s32 %s22, 1
        %s319 = sand.u32 %s35, 1
        %s320 = scalar_lea.sflag [#allocation5], %s319
        %s321 = sand.u32 %s35, 1
        %s322 = smul.addr %s321, 16
        %s323 = scalar_lea.vmem [#allocation4], %s322
        // Predicated region
        $region53: #{tpu_custom_call.1} parent=51 // pred_check
          %p324 = pneg %p48
        $region54: #{tpu_custom_call.1} parent=51 // pred_check_branch
          %326 = sbr.rel (%p324) target = $region56
        $region55: #{tpu_custom_call.1} parent=51 // pred_region
          %327 = dma.done %s320, 256
        $region56: #{tpu_custom_call.1} parent=51 // pred_fallthru
          _
        // Predicated region
        $region57: #{tpu_custom_call.1} parent=51 // pred_check
          %p328 = pneg %p69
        $region58: #{tpu_custom_call.1} parent=51 // pred_check_branch
          %330 = sbr.rel (%p328) target = $region60
        $region59: #{tpu_custom_call.1} parent=51 // pred_region
          %331 = dma.done [#allocation8], 1024
        $region60: #{tpu_custom_call.1} parent=51 // pred_fallthru
          _
        // Predicated region
        $region61: #{tpu_custom_call.1} parent=51 // pred_check
          %p332 = pneg %p132
        $region62: #{tpu_custom_call.1} parent=51 // pred_check_branch
          %334 = sbr.rel (%p332) target = $region64
        $region63: #{tpu_custom_call.1} parent=51 // pred_region
          %335 = dma.done [#allocation8], 256
        $region64: #{tpu_custom_call.1} parent=51 // pred_fallthru
          _
        // Predicated region
        $region65: #{tpu_custom_call.1} parent=51 // pred_check
          %p336 = pneg %p153
        $region66: #{tpu_custom_call.1} parent=51 // pred_check_branch
          %338 = sbr.rel (%p336) target = $region68
        $region67: #{tpu_custom_call.1} parent=51 // pred_region
          %339 = dma.done [#allocation11], 1024
        $region68: #{tpu_custom_call.1} parent=51 // pred_fallthru
          _
        %s340 = sand.u32 %s35, 1
        %s341 = scalar_lea.sflag [#allocation5], %s340
        %s342 = sand.u32 %s35, 1
        %s343 = smul.addr %s342, 16
        %s344 = scalar_lea.vmem [#allocation4], %s343
        %p345 = pneg %p48
        %p346 = pneg %p45
        %p347 = pneg %p69
        %p348 = pneg %p66
        %p349 = pneg %p90
        %p350 = pneg %p87
        %p351 = pneg %p111
        %p352 = pneg %p108
        %p353 = pneg %p132
        %p354 = pneg %p129
        %p355 = pneg %p153
        %p356 = pneg %p150
        %p357 = pneg %p174
        %p358 = pneg %p171
        %p359 = pneg %p195
        %p360 = pneg %p192
        %p361 = pneg %p221
        %p362 = pneg %p218
        %s363 = sand.u32 %s208, 1
        %s364 = scalar_lea.sflag [#allocation6], %s363
        %s365 = sand.u32 %s208, 1
        %s366 = smul.addr %s365, 16
        %s367 = scalar_lea.vmem [#allocation12], %s366
        %v369 = vld [vmem:[%s323] sm:$0xff]
        %v370 = vld [vmem:[%s323 + $0x8] sm:$0xff]
        %v371 = vpack.c.bf16 %v370, %v369
        %v372 = vld [vmem:[#allocation7] sm:$0xff]
        %v373 = vld [vmem:[#allocation7 + $0x8] sm:$0xff]
        %v374 = vld [vmem:[#allocation7 + $0x10] sm:$0xff]
        %v375 = vld [vmem:[#allocation7 + $0x18] sm:$0xff]
        %v376 = vld [vmem:[#allocation7 + $0x20] sm:$0xff]
        %v377 = vld [vmem:[#allocation7 + $0x28] sm:$0xff]
        %v378 = vld [vmem:[#allocation7 + $0x30] sm:$0xff]
        %v379 = vld [vmem:[#allocation7 + $0x38] sm:$0xff]
        %v388 = vunpack.c.l.b16 %v372
        %v389 = vunpack.c.h.b16 %v372
        %v390 = vunpack.c.l.b16 %v373
        %v391 = vunpack.c.h.b16 %v373
        %v392 = vunpack.c.l.b16 %v374
        %v393 = vunpack.c.h.b16 %v374
        %v394 = vunpack.c.l.b16 %v375
        %v395 = vunpack.c.h.b16 %v375
        %v396 = vunpack.c.l.b16 %v376
        %v397 = vunpack.c.h.b16 %v376
        %v398 = vunpack.c.l.b16 %v377
        %v399 = vunpack.c.h.b16 %v377
        %v400 = vunpack.c.l.b16 %v378
        %v401 = vunpack.c.h.b16 %v378
        %v402 = vunpack.c.l.b16 %v379
        %v403 = vunpack.c.h.b16 %v379
        %v404 = vpack.c.b16 %v390, %v388
        %v405 = vpack.c.b16 %v391, %v389
        %v406 = vpack.c.b16 %v394, %v392
        %v407 = vpack.c.b16 %v395, %v393
        %v408 = vpack.c.b16 %v398, %v396
        %v409 = vpack.c.b16 %v399, %v397
        %v410 = vpack.c.b16 %v402, %v400
        %v411 = vpack.c.b16 %v403, %v401
        %vm420 = vcmask 523264
        %v422 = vsel %vm420, %v371, 0
        %424 = vmatprep.subr.bf16.mxu0 %v405
        %425 = vmatpush1.bf16.msra.mxu0 %v404
        %426 = vmatprep.subr.bf16.mxu0 %v407
        %427 = vmatpush1.bf16.msra.mxu0 %v406
        %428 = vmatprep.subr.bf16.mxu0 %v409
        %429 = vmatpush1.bf16.msra.mxu0 %v408
        %430 = vmatprep.subr.bf16.mxu0 %v411
        %431 = vmatpush1.bf16.msra.mxu0 %v410
        %432 = vmatprep.subr.bf16.mxu0 0
        %433 = vmatpush1.bf16.msra.mxu0 0
        %434 = vmatprep.subr.bf16.mxu0 0
        %435 = vmatpush1.bf16.msra.mxu0 0
        %436 = vmatprep.subr.bf16.mxu0 0
        %437 = vmatpush1.bf16.msra.mxu0 0
        %438 = vmatprep.subr.bf16.mxu0 0
        %439 = vmatpush1.bf16.msra.mxu0 0
        %440 = vmatprep.subr.bf16.mxu0 0
        %441 = vmatpush1.bf16.msra.mxu0 0
        %442 = vmatprep.subr.bf16.mxu0 0
        %443 = vmatpush1.bf16.msra.mxu0 0
        %444 = vmatprep.subr.bf16.mxu0 0
        %445 = vmatpush1.bf16.msra.mxu0 0
        %446 = vmatprep.subr.bf16.mxu0 0
        %447 = vmatpush1.bf16.msra.mxu0 0
        %448 = vmatprep.subr.bf16.mxu0 0
        %449 = vmatpush1.bf16.msra.mxu0 0
        %450 = vmatprep.subr.bf16.mxu0 0
        %451 = vmatpush1.bf16.msra.mxu0 0
        %452 = vmatprep.subr.bf16.mxu0 0
        %453 = vmatpush1.bf16.msra.mxu0 0
        %454 = vmatprep.subr.bf16.mxu0 0
        %455 = vmatpush1.bf16.msra.mxu0 0
        %456 = vmatprep.mubr.bf16.mxu0 0
        %457 = vmatmul.mubr.bf16.gmra.mrb[0].mxu0 %v422
        %v458 = vpop.f32.mrb[0].mxu0
        %v459 = vadd.f32 0.0, %v458
        %v460 = vpop.f32.mrb[0].mxu0
        %v461 = vadd.f32 0.0, %v460
        %v462 = vpop.f32.mrb[0].mxu0
        %v463 = vadd.f32 0.0, %v462
        %v464 = vpop.f32.mrb[0].mxu0
        %v465 = vadd.f32 0.0, %v464
        %466 = vdwg.mxu0
        %v467 = vld [vmem:[%s2] sm:$0x1]
        %v469 = vlaneseq
        %v470 = vshrl.u32 %v469, 7
        %v471 = vsub.s32 0, %v470
        %v472 = vrot.slane %v467, %v471
        %v474 = vadd.f32 %v459, %v472
        %v475 = vadd.f32 %v463, %v472
        %v476 = vmax.f32 %v474, 0.0
        %v477 = vmax.f32 %v475, 0.0
        %478 = vst [vmem:[#allocation2] sm:$0x1] 0.0
        %479 = vst [vmem:[#allocation2 + $0x11] sm:$0x1] 0.0
        %480 = vst [vmem:[#allocation2 + $0x1] sm:$0xff] %v476
        %481 = vst [vmem:[#allocation2 + $0x9] sm:$0xff] %v477
        %v482 = vld [vmem:[#allocation2] sm:$0xff]
        %v483 = vld [vmem:[#allocation2 + $0x8] sm:$0xff]
        %484 = vrot.lane.b32.xlu0 %v482, 1
        %v485 = vpop.permute.xlu0 %484
        %486 = vrot.lane.b32.xlu0 %v483, 1
        %v487 = vpop.permute.xlu0 %486
        %v488 = vld [vmem:[#allocation9] sm:$0x1]
        %v489 = vlaneseq
        %v490 = vshrl.u32 %v489, 7
        %v491 = vsub.s32 0, %v490
        %v492 = vrot.slane %v488, %v491
        %v493 = vmul.f32 %v485, %v492
        %v494 = vmul.f32 %v487, %v492
        %v495 = vld [vmem:[#allocation9 + $0x1] sm:$0x1]
        %v496 = vlaneseq
        %v497 = vshrl.u32 %v496, 7
        %v498 = vsub.s32 0, %v497
        %v499 = vrot.slane %v495, %v498
        %v500 = vmul.f32 %v482, %v499
        %v501 = vmul.f32 %v483, %v499
        %v502 = vadd.f32 %v493, %v500
        %v503 = vadd.f32 %v494, %v501
        %504 = vrot.lane.b32.xlu0 %v482, 127
        %v505 = vpop.permute.xlu0 %504
        %506 = vrot.lane.b32.xlu0 %v483, 127
        %v507 = vpop.permute.xlu0 %506
        %v508 = vld [vmem:[#allocation9 + $0x2] sm:$0x1]
        %v509 = vlaneseq
        %v510 = vshrl.u32 %v509, 7
        %v511 = vsub.s32 0, %v510
        %v512 = vrot.slane %v508, %v511
        %v513 = vmul.f32 %v505, %v512
        %v514 = vmul.f32 %v507, %v512
        %v515 = vadd.f32 %v502, %v513
        %v516 = vadd.f32 %v503, %v514
        %v517 = vld [vmem:[#allocation2 + $0x1] sm:$0xff]
        %v518 = vld [vmem:[#allocation2 + $0x9] sm:$0xff]
        %519 = vrot.lane.b32.xlu0 %v517, 1
        %v520 = vpop.permute.xlu0 %519
        %521 = vrot.lane.b32.xlu0 %v518, 1
        %v522 = vpop.permute.xlu0 %521
        %v523 = vld [vmem:[#allocation9 + $0x3] sm:$0x1]
        %v524 = vlaneseq
        %v525 = vshrl.u32 %v524, 7
        %v526 = vsub.s32 0, %v525
        %v527 = vrot.slane %v523, %v526
        %v528 = vmul.f32 %v520, %v527
        %v529 = vmul.f32 %v522, %v527
        %v530 = vadd.f32 %v515, %v528
        %v531 = vadd.f32 %v516, %v529
        %v532 = vld [vmem:[#allocation9 + $0x4] sm:$0x1]
        %v533 = vlaneseq
        %v534 = vshrl.u32 %v533, 7
        %v535 = vsub.s32 0, %v534
        %v536 = vrot.slane %v532, %v535
        %v537 = vmul.f32 %v517, %v536
        %v538 = vmul.f32 %v518, %v536
        %v539 = vadd.f32 %v530, %v537
        %v540 = vadd.f32 %v531, %v538
        %541 = vrot.lane.b32.xlu0 %v517, 127
        %v542 = vpop.permute.xlu0 %541
        %543 = vrot.lane.b32.xlu0 %v518, 127
        %v544 = vpop.permute.xlu0 %543
        %v545 = vld [vmem:[#allocation9 + $0x5] sm:$0x1]
        %v546 = vlaneseq
        %v547 = vshrl.u32 %v546, 7
        %v548 = vsub.s32 0, %v547
        %v549 = vrot.slane %v545, %v548
        %v550 = vmul.f32 %v542, %v549
        %v551 = vmul.f32 %v544, %v549
        %v552 = vadd.f32 %v539, %v550
        %v553 = vadd.f32 %v540, %v551
        %v554 = vld [vmem:[#allocation2 + $0x2] sm:$0xff]
        %v555 = vld [vmem:[#allocation2 + $0xa] sm:$0xff]
        %556 = vrot.lane.b32.xlu0 %v554, 1
        %v557 = vpop.permute.xlu0 %556
        %558 = vrot.lane.b32.xlu0 %v555, 1
        %v559 = vpop.permute.xlu0 %558
        %v560 = vld [vmem:[#allocation9 + $0x6] sm:$0x1]
        %v561 = vlaneseq
        %v562 = vshrl.u32 %v561, 7
        %v563 = vsub.s32 0, %v562
        %v564 = vrot.slane %v560, %v563
        %v565 = vmul.f32 %v557, %v564
        %v566 = vmul.f32 %v559, %v564
        %v567 = vadd.f32 %v552, %v565
        %v568 = vadd.f32 %v553, %v566
        %v569 = vld [vmem:[#allocation9 + $0x7] sm:$0x1]
        %v570 = vlaneseq
        %v571 = vshrl.u32 %v570, 7
        %v572 = vsub.s32 0, %v571
        %v573 = vrot.slane %v569, %v572
        %v574 = vmul.f32 %v554, %v573
        %v575 = vmul.f32 %v555, %v573
        %v576 = vadd.f32 %v567, %v574
        %v577 = vadd.f32 %v568, %v575
        %578 = vrot.lane.b32.xlu0 %v554, 127
        %v579 = vpop.permute.xlu0 %578
        %580 = vrot.lane.b32.xlu0 %v555, 127
        %v581 = vpop.permute.xlu0 %580
        %v582 = vld [vmem:[#allocation9 + $0x8] sm:$0x1]
        %v583 = vlaneseq
        %v584 = vshrl.u32 %v583, 7
        %v585 = vsub.s32 0, %v584
        %v586 = vrot.slane %v582, %v585
        %v587 = vmul.f32 %v579, %v586
        %v588 = vmul.f32 %v581, %v586
        %v589 = vadd.f32 %v576, %v587
        %v590 = vadd.f32 %v577, %v588
        %v591 = vld [vmem:[%s3] sm:$0x1]
        %v593 = vlaneseq
        %v594 = vshrl.u32 %v593, 7
        %v595 = vsub.s32 0, %v594
        %v596 = vrot.slane %v591, %v595
        %v598 = vadd.f32 %v589, %v596
        %v599 = vadd.f32 %v590, %v596
        %v600 = vmax.f32 %v598, 0.0
        %v601 = vmax.f32 %v599, 0.0
        %v602 = vpack.c.bf16 %v601, %v600
        %603 = vst [vmem:[#allocation3] sm:$0xff] %v602
        %v604 = vld [vmem:[#allocation3] sm:$0xff]
        %v605 = vld [vmem:[#allocation10] sm:$0xf]
        %v606 = vld [vmem:[#allocation10 + $0x4] sm:$0xf]
        %v607 = vld [vmem:[#allocation10 + $0x8] sm:$0xf]
        %v608 = vld [vmem:[#allocation10 + $0xc] sm:$0xf]
        %v609 = vld [vmem:[#allocation10 + $0x10] sm:$0xf]
        %v610 = vld [vmem:[#allocation10 + $0x14] sm:$0xf]
        %v611 = vld [vmem:[#allocation10 + $0x18] sm:$0xf]
        %v612 = vld [vmem:[#allocation10 + $0x1c] sm:$0xf]
        %v613 = vld [vmem:[#allocation10 + $0x20] sm:$0xf]
        %v614 = vld [vmem:[#allocation10 + $0x24] sm:$0xf]
        %v615 = vld [vmem:[#allocation10 + $0x28] sm:$0xf]
        %v616 = vld [vmem:[#allocation10 + $0x2c] sm:$0xf]
        %v617 = vld [vmem:[#allocation10 + $0x30] sm:$0xf]
        %v618 = vld [vmem:[#allocation10 + $0x34] sm:$0xf]
        %v619 = vld [vmem:[#allocation10 + $0x38] sm:$0xf]
        %v620 = vld [vmem:[#allocation10 + $0x3c] sm:$0xf]
        %v621 = vld [vmem:[%s6] sm:$0x1]
        %v623 = vlaneseq
        %v624 = vshrl.u32 %v623, 7
        %v625 = vsub.s32 0, %v624
        %v626 = vrot.slane %v621, %v625
        %v644 = vunpack.c.l.b16 %v605
        %v645 = vunpack.c.l.b16 %v606
        %v646 = vunpack.c.l.b16 %v607
        %v647 = vunpack.c.l.b16 %v608
        %v648 = vunpack.c.l.b16 %v609
        %v649 = vunpack.c.l.b16 %v610
        %v650 = vunpack.c.l.b16 %v611
        %v651 = vunpack.c.l.b16 %v612
        %v652 = vunpack.c.l.b16 %v613
        %v653 = vunpack.c.l.b16 %v614
        %v654 = vunpack.c.l.b16 %v615
        %v655 = vunpack.c.l.b16 %v616
        %v656 = vunpack.c.l.b16 %v617
        %v657 = vunpack.c.l.b16 %v618
        %v658 = vunpack.c.l.b16 %v619
        %v659 = vunpack.c.l.b16 %v620
        %v660 = vpack.c.b16 %v645, %v644
        %v661 = vpack.c.b16 %v647, %v646
        %v662 = vpack.c.b16 %v649, %v648
        %v663 = vpack.c.b16 %v651, %v650
        %v664 = vpack.c.b16 %v653, %v652
        %v665 = vpack.c.b16 %v655, %v654
        %v666 = vpack.c.b16 %v657, %v656
        %v667 = vpack.c.b16 %v659, %v658
        %676 = vmatprep.subr.bf16.mxu0 0
        %677 = vmatpush1.bf16.msra.mxu0 %v660
        %678 = vmatprep.subr.bf16.mxu0 0
        %679 = vmatpush1.bf16.msra.mxu0 %v661
        %680 = vmatprep.subr.bf16.mxu0 0
        %681 = vmatpush1.bf16.msra.mxu0 %v662
        %682 = vmatprep.subr.bf16.mxu0 0
        %683 = vmatpush1.bf16.msra.mxu0 %v663
        %684 = vmatprep.subr.bf16.mxu0 0
        %685 = vmatpush1.bf16.msra.mxu0 %v664
        %686 = vmatprep.subr.bf16.mxu0 0
        %687 = vmatpush1.bf16.msra.mxu0 %v665
        %688 = vmatprep.subr.bf16.mxu0 0
        %689 = vmatpush1.bf16.msra.mxu0 %v666
        %690 = vmatprep.subr.bf16.mxu0 0
        %691 = vmatpush1.bf16.msra.mxu0 %v667
        %692 = vmatprep.subr.bf16.mxu0 0
        %693 = vmatpush1.bf16.msra.mxu0 0
        %694 = vmatprep.subr.bf16.mxu0 0
        %695 = vmatpush1.bf16.msra.mxu0 0
        %696 = vmatprep.subr.bf16.mxu0 0
        %697 = vmatpush1.bf16.msra.mxu0 0
        %698 = vmatprep.subr.bf16.mxu0 0
        %699 = vmatpush1.bf16.msra.mxu0 0
        %700 = vmatprep.subr.bf16.mxu0 0
        %701 = vmatpush1.bf16.msra.mxu0 0
        %702 = vmatprep.subr.bf16.mxu0 0
        %703 = vmatpush1.bf16.msra.mxu0 0
        %704 = vmatprep.subr.bf16.mxu0 0
        %705 = vmatpush1.bf16.msra.mxu0 0
        %706 = vmatprep.subr.bf16.mxu0 0
        %707 = vmatpush1.bf16.msra.mxu0 0
        %708 = vmatprep.mubr.bf16.mxu0 0
        %709 = vmatmul.mubr.bf16.gmra.mrb[0].mxu0 %v604
        %v710 = vpop.f32.mrb[0].mxu0
        %v711 = vadd.f32 %v626, %v710
        %v712 = vpop.f32.mrb[0].mxu0
        %v713 = vpop.f32.mrb[0].mxu0
        %v714 = vadd.f32 %v626, %v713
        %v715 = vpop.f32.mrb[0].mxu0
        %716 = vdwg.mxu0
        %v717 = vld [vmem:[%s7] sm:$0x1]
        %v719 = vlaneseq
        %v720 = vshrl.u32 %v719, 7
        %v721 = vsub.s32 0, %v720
        %v722 = vrot.slane %v717, %v721
        %v724 = vadd.f32 %v461, %v722
        %v725 = vadd.f32 %v465, %v722
        %v726 = vadd.f32 %v711, %v724
        %v727 = vadd.f32 %v714, %v725
        %728 = vst [vmem:[%s367] sm:$0xff] %v726
        %729 = vst [vmem:[%s367 + $0x8] sm:$0xff] %v727
        %s730 = sand.u32 %s208, 1
        %s731 = scalar_lea.sflag [#allocation6], %s730
        %s732 = sand.u32 %s208, 1
        %s733 = smul.addr %s732, 16
        %s734 = scalar_lea.vmem [#allocation12], %s733
        // Predicated region
        $region69: #{tpu_custom_call.1} parent=51 // pred_check
          %p735 = pneg %p218
        $region70: #{tpu_custom_call.1} parent=51 // pred_check_branch
          %737 = sbr.rel (%p735) target = $region72
        $region71: #{tpu_custom_call.1} parent=51 // pred_region
          %s739 = ssub.s32 256, 256
          %740 = vsyncadd %s731, %s739
          %s741 = smul.addr %s27, 2
          %s742 = smul.addr %s741, 128
          %s743 = scalar_lea.hbm %s8, %s742
          %s744 = sshll.u32 %s734, 4
          %s745 = int_to_ptr.vmem [resolvable:$true] %s744
          %750 = dma.vmem_to_hbm [thread:$0]  %s745, 256, %s743, %s731, 128, 128, 8
        $region72: #{tpu_custom_call.1} parent=51 // pred_fallthru
          _
      $region52: #{tpu_custom_call.1} parent=5 // pred_fallthru
        _
      %p751 = scmp.le.s32.totalorder 2, %s22
      // Predicated region
      $region73: #{tpu_custom_call.1} parent=5 // pred_check
        %p752 = pneg %p751
      $region74: #{tpu_custom_call.1} parent=5 // pred_check_branch
        %754 = sbr.rel (%p752) target = $region76
      $region75: #{tpu_custom_call.1} parent=5 // pred_region
        %s755 = ssub.s32 %s22, 2
        // Predicated region
        $region77: #{tpu_custom_call.1} parent=75 // pred_check
          %p756 = pneg %p224
        $region78: #{tpu_custom_call.1} parent=75 // pred_check_branch
          %758 = sbr.rel (%p756) target = $region80
        $region79: #{tpu_custom_call.1} parent=75 // pred_region
          %s759 = sand.u32 %s209, 1
          %s760 = scalar_lea.sflag [#allocation6], %s759
          %s761 = sand.u32 %s209, 1
          %s762 = smul.addr %s761, 16
          %s763 = scalar_lea.vmem [#allocation12], %s762
          %764 = dma.done %s760, 256
        $region80: #{tpu_custom_call.1} parent=75 // pred_fallthru
          _
      $region76: #{tpu_custom_call.1} parent=5 // pred_fallthru
        _
    $region6: #{tpu_custom_call.1} parent=1 // loop_footer
      %s26 = sadd.s32 1, %s22
    $region7: #{tpu_custom_call.1} parent=1 // loop_footer_branch
      %21 = sbr.rel target = $region3
    $region8: #{tpu_custom_call.1} parent=1 // loop_exit
      _
    %765 = vsyncpa [#allocation5], 1
    %s766 = scalar_lea.sflag [#allocation5], 1
    %767 = vsyncpa %s766, 1
    %768 = vsyncpa [#allocation8], 1
    %769 = vsyncpa [#allocation11], 1
    %770 = vsyncpa [#allocation6], 1
    %s771 = scalar_lea.sflag [#allocation6], 1
    %772 = vsyncpa %s771, 1

</llo_original>
